<compile_context>
chip_gen: v6e
topology: v6e:2x2x1
jax: 0.10.0
libtpu: 0.0.40
codegen_flags: <defaults>
</compile_context>

<pallas_src>
import jax
import jax.numpy as jnp
import numpy as np
from jax import lax
from jax.experimental import pallas as pl
from jax.experimental.pallas import tpu as pltpu


def _round_up(x, m):
    return (x + m - 1) // m * m


# --------------------------------------------------------------------------------------
# Kernel 1: layer-0 gate pre-activations for the whole sequence (input_proj folded in).
#   g0 = comb @ (W_in^T @ W_ih0^T)  +  (b_in @ W_ih0^T + b_ih0 + b_hh0)
# M-tiled over rows of comb; weights/bias blocks are constant (Buffered(1)).
# --------------------------------------------------------------------------------------
def _l0_gates_kernel(comb_ref, w0_ref, b0_ref, out_ref):
    out_ref[...] = (
        jnp.dot(comb_ref[...], w0_ref[...], preferred_element_type=jnp.float32)
        + b0_ref[...]
    ).astype(out_ref.dtype)


# --------------------------------------------------------------------------------------
# Kernel 2: multi-layer LSTM recurrence over T (inside the kernel) + MLP classifier.
#   g0_ref  : (T, Bt, 4*Hp)  precomputed layer-0 gate pre-activations for this batch tile
#   whh_ref : (L,  Hp, 4*Hp) W_hh^T per layer (gate blocks lane-aligned at g*Hp)
#   wih_ref : (Lu, Hp, 4*Hp) W_ih^T for layers 1..L-1 (Lu = max(L-1,1); unused if L == 1)
#   bup_ref : (Lu, 1, 4*Hp)  b_ih + b_hh for layers 1..L-1
#   w1_ref  : (Hp, Cp)  b1_ref: (1, Cp)  w2_ref: (Cp, 128)  b2_ref: (1, 128)
#   out_ref : (Bt, 128)  (only column 0 / rows [:B] are meaningful)
# --------------------------------------------------------------------------------------
def _lstm_cls_kernel(g0_ref, whh_ref, wih_ref, bup_ref, w1_ref, b1_ref, w2_ref, b2_ref,
                     out_ref):
    T, Bt, fourHp = g0_ref.shape
    Hp = fourHp // 4
    L = whh_ref.shape[0]
    cdt = whh_ref.dtype            # MXU compute dtype (f32 or bf16)
    f32 = jnp.float32

    # Hoist upper-layer bias loads + broadcasts out of the (unrolled) time loop.
    bups = [jnp.broadcast_to(bup_ref[l - 1].astype(f32), (Bt, fourHp)) for l in range(1, L)]

    def step(t, carry):
        hs, cs = carry                            # tuples of L arrays, each (Bt, Hp) f32
        new_h, new_c = [], []
        x_gates = g0_ref[t].astype(f32)           # (Bt, 4*Hp): layer-0 i2h + biases, precomputed
        for l in range(L):                        # static layer unroll
            if l == 0:
                gates = x_gates + jnp.dot(hs[0].astype(cdt), whh_ref[0],
                                          preferred_element_type=f32)
            else:
                inp = new_h[l - 1]
                gates = (jnp.dot(inp.astype(cdt), wih_ref[l - 1],
                                 preferred_element_type=f32)
                         + jnp.dot(hs[l].astype(cdt), whh_ref[l],
                                   preferred_element_type=f32)
                         + bups[l - 1])
            # gate slices land on 128-lane boundaries (Hp is a multiple of 128)
            i_g = jax.nn.sigmoid(gates[:, 0 * Hp:1 * Hp])
            f_g = jax.nn.sigmoid(gates[:, 1 * Hp:2 * Hp])
            g_g = jnp.tanh(gates[:, 2 * Hp:3 * Hp])
            o_g = jax.nn.sigmoid(gates[:, 3 * Hp:4 * Hp])
            c_n = f_g * cs[l] + i_g * g_g
            h_n = o_g * jnp.tanh(c_n)
            new_h.append(h_n)
            new_c.append(c_n)
            # TODO(synk): inter-layer dropout (p=0.1) is training-only in PyTorch; eval semantics.
        return tuple(new_h), tuple(new_c)

    zeros = jnp.zeros((Bt, Hp), f32)
    init = (tuple(zeros for _ in range(L)), tuple(zeros for _ in range(L)))
    hs, _ = lax.fori_loop(0, T, step, init, unroll=min(T, 8))   # bounded unroll

    # classifier on the last timestep's top-layer hidden state
    hid = jnp.maximum(
        jnp.dot(hs[-1].astype(cdt), w1_ref[...], preferred_element_type=f32) + b1_ref[...],
        0.0)
    logit = jnp.dot(hid.astype(cdt), w2_ref[...], preferred_element_type=f32) + b2_ref[...]
    out_ref[...] = jax.nn.sigmoid(logit).astype(out_ref.dtype)


# --------------------------------------------------------------------------------------
# One-time host-side weight fusion / re-layout / padding (numpy; call once & cache).
# --------------------------------------------------------------------------------------
def prepare_discriminator_weights(params, compute_dtype=jnp.float32):
    f32 = np.float32
    w_in = np.asarray(params['w_in'], f32)    # (H, Fc)
    b_in = np.asarray(params['b_in'], f32)    # (H,)
    w_ih = np.asarray(params['w_ih'], f32)    # (L, 4H, H)
    w_hh = np.asarray(params['w_hh'], f32)    # (L, 4H, H)
    b_ih = np.asarray(params['b_ih'], f32)    # (L, 4H)
    b_hh = np.asarray(params['b_hh'], f32)    # (L, 4H)
    w1 = np.asarray(params['w1'], f32)        # (C, H)
    b1 = np.asarray(params['b1'], f32)        # (C,)
    w2 = np.asarray(params['w2'], f32)        # (1, C)
    b2 = np.asarray(params['b2'], f32)        # (1,)

    H, Fc = w_in.shape
    L = w_ih.shape[0]
    C = w1.shape[0]
    Hp = _round_up(H, 128)
    Cp = _round_up(C, 128)
    Lu = max(L - 1, 1)

    # Fold input_proj into layer-0 i2h (PyTorch gate order i, f, g, o; gate blocks at g*Hp).
    w0 = np.zeros((Fc, 4 * Hp), f32)
    b0 = np.zeros((1, 4 * Hp), f32)
    winT = w_in.astype(np.float64).T          # (Fc, H)
    bin64 = b_in.astype(np.float64)
    for g in range(4):
        wih0_g = w_ih[0, g * H:(g + 1) * H, :].astype(np.float64)      # (H, H)
        w0[:, g * Hp:g * Hp + H] = (winT @ wih0_g.T).astype(f32)
        b0[0, g * Hp:g * Hp + H] = ((bin64 @ wih0_g.T).astype(f32)
                                    + b_ih[0, g * H:(g + 1) * H]
                                    + b_hh[0, g * H:(g + 1) * H])

    whhT = np.zeros((L, Hp, 4 * Hp), f32)
    wihT = np.zeros((Lu, Hp, 4 * Hp), f32)
    bup = np.zeros((Lu, 1, 4 * Hp), f32)
    for l in range(L):
        for g in range(4):
            whhT[l, :H, g * Hp:g * Hp + H] = w_hh[l, g * H:(g + 1) * H, :].T
            if l >= 1:
                wihT[l - 1, :H, g * Hp:g * Hp + H] = w_ih[l, g * H:(g + 1) * H, :].T
                bup[l - 1, 0, g * Hp:g * Hp + H] = (b_ih[l, g * H:(g + 1) * H]
                                                    + b_hh[l, g * H:(g + 1) * H])

    w1T = np.zeros((Hp, Cp), f32); w1T[:H, :C] = w1.T
    b1p = np.zeros((1, Cp), f32);  b1p[0, :C] = b1
    w2T = np.zeros((Cp, 128), f32); w2T[:C, 0] = w2[0]
    b2p = np.zeros((1, 128), f32);  b2p[0, 0] = b2[0]

    cdt = compute_dtype
    return {
        'w0': jnp.asarray(w0, cdt), 'b0': jnp.asarray(b0, jnp.float32),
        'whhT': jnp.asarray(whhT, cdt), 'wihT': jnp.asarray(wihT, cdt),
        'bup': jnp.asarray(bup, jnp.float32),
        'w1T': jnp.asarray(w1T, cdt), 'b1': jnp.asarray(b1p, jnp.float32),
        'w2T': jnp.asarray(w2T, cdt), 'b2': jnp.asarray(b2p, jnp.float32),
    }


# --------------------------------------------------------------------------------------
# Forward wrapper: two pallas_calls (layer-0 precompute, recurrence + classifier).
# --------------------------------------------------------------------------------------
def discriminator_forward(x, y, prep, *, b_tile=None, interpret=False):
    f32 = jnp.float32
    cdt = prep['w0'].dtype
    B, T, F = x.shape
    O = y.shape[1]
    Fc = F + O
    assert Fc == prep['w0'].shape[0]
    L, Hp, fourHp = prep['whhT'].shape
    Lu = prep['wihT'].shape[0]
    Cp = prep['w1T'].shape[1]

    if b_tile is None:
        # Large batch tile = more MXU rows per recurrent dot + fewer serial grid iterations.
        # TODO(synk): on v7x keep >= 2 batch tiles so ("parallel",) shards across both TCs.
        b_tile = min(_round_up(B, 8), 128)
    Bp = _round_up(B, b_tile)

    # ---- input prep: pad batch, repeat y across T, time-major, flatten to (T*Bp, Fc) ----
    x_p = jnp.zeros((Bp, T, F), f32).at[:B].set(x)
    y_p = jnp.zeros((Bp, O), f32).at[:B].set(y)
    comb = jnp.concatenate(
        [jnp.transpose(x_p, (1, 0, 2)),                        # (T, Bp, F)
         jnp.broadcast_to(y_p[None, :, :], (T, Bp, O))],       # (T, Bp, O)
        axis=2).astype(cdt)
    M = T * Bp
    tile_m = min(512, _round_up(M, 8))
    Mp = _round_up(M, tile_m)
    comb_flat = jnp.zeros((Mp, Fc), cdt).at[:M].set(comb.reshape(M, Fc))

    # ---- kernel 1: layer-0 gate pre-activations, M-tiled + megacore parallel ----
    g0_flat = pl.pallas_call(
        _l0_gates_kernel,
        out_shape=jax.ShapeDtypeStruct((Mp, fourHp), cdt),
        grid_spec=pltpu.PrefetchScalarGridSpec(
            num_scalar_prefetch=0,
            grid=(Mp // tile_m,),
            in_specs=[
                pl.BlockSpec((tile_m, Fc), lambda i: (i, 0)),
                pl.BlockSpec((Fc, fourHp), lambda i: (0, 0),
                             pipeline_mode=pl.Buffered(1)),
                pl.BlockSpec((1, fourHp), lambda i: (0, 0),
                             pipeline_mode=pl.Buffered(1)),
            ],
            out_specs=pl.BlockSpec((tile_m, fourHp), lambda i: (i, 0)),
        ),
        compiler_params=pltpu.CompilerParams(dimension_semantics=("parallel",)),
        interpret=interpret,
    )(comb_flat, prep['w0'], prep['b0'])
    g0 = g0_flat[:M].reshape(T, Bp, fourHp)

    # ---- kernel 2: recurrence + classifier, grid over independent batch tiles ----
    n_btiles = Bp // b_tile
    out_p = pl.pallas_call(
        _lstm_cls_kernel,
        out_shape=jax.ShapeDtypeStruct((Bp, 128), f32),
        grid_spec=pltpu.PrefetchScalarGridSpec(
            num_scalar_prefetch=0,
            grid=(n_btiles,),
            in_specs=[
                pl.BlockSpec((T, b_tile, fourHp), lambda b: (0, b, 0)),      # precomputed seq
                pl.BlockSpec((L, Hp, fourHp), lambda b: (0, 0, 0),           # W_hh^T (resident)
                             pipeline_mode=pl.Buffered(1)),
                pl.BlockSpec((Lu, Hp, fourHp), lambda b: (0, 0, 0),          # W_ih^T layers>=1
                             pipeline_mode=pl.Buffered(1)),
                pl.BlockSpec((Lu, 1, fourHp), lambda b: (0, 0, 0),           # biases layers>=1
                             pipeline_mode=pl.Buffered(1)),
                pl.BlockSpec((Hp, Cp), lambda b: (0, 0),
                             pipeline_mode=pl.Buffered(1)),                  # W1^T
                pl.BlockSpec((1, Cp), lambda b: (0, 0),
                             pipeline_mode=pl.Buffered(1)),                  # b1
                pl.BlockSpec((Cp, 128), lambda b: (0, 0),
                             pipeline_mode=pl.Buffered(1)),                  # W2^T
                pl.BlockSpec((1, 128), lambda b: (0, 0),
                             pipeline_mode=pl.Buffered(1)),                  # b2
            ],
            out_specs=pl.BlockSpec((b_tile, 128), lambda b: (b, 0)),
        ),
        compiler_params=pltpu.CompilerParams(
            # batch tiles are fully independent across the recurrence -> megacore-parallel
            dimension_semantics=("parallel",)),
        interpret=interpret,
    )(g0, prep['whhT'], prep['wihT'], prep['bup'],
      prep['w1T'], prep['b1'], prep['w2T'], prep['b2'])

    return out_p[:B, :1]


# --------------------------------------------------------------------------------------
# Pure-JAX reference matching the PyTorch forward (eval mode).
# --------------------------------------------------------------------------------------
def reference_forward(x, y, params):
    B, T, F = x.shape
    L, _, H = params['w_hh'].shape
    y_rep = jnp.repeat(y[:, None, :], T, axis=1)
    combined = jnp.concatenate([x, y_rep], axis=2)
    seq = combined @ params['w_in'].T + params['b_in']        # (B, T, H)

    h = jnp.zeros((L, B, H), jnp.float32)
    c = jnp.zeros((L, B, H), jnp.float32)
    out_last = None
    for t in range(T):
        inp = seq[:, t, :]
        for l in range(L):
            gates = (inp @ params['w_ih'][l].T + h[l] @ params['w_hh'][l].T
                     + params['b_ih'][l] + params['b_hh'][l])
            i_g = jax.nn.sigmoid(gates[:, 0 * H:1 * H])
            f_g = jax.nn.sigmoid(gates[:, 1 * H:2 * H])
            g_g = jnp.tanh(gates[:, 2 * H:3 * H])
            o_g = jax.nn.sigmoid(gates[:, 3 * H:4 * H])
            c_new = f_g * c[l] + i_g * g_g
            h_new = o_g * jnp.tanh(c_new)
            h = h.at[l].set(h_new)
            c = c.at[l].set(c_new)
            inp = h_new
        out_last = inp
    hid = jnp.maximum(out_last @ params['w1'].T + params['b1'], 0.0)
    return jax.nn.sigmoid(hid @ params['w2'].T + params['b2'])


def init_params(key, feature_dim, hidden_dim, num_layers, output_dim=1):
    ks = jax.random.split(key, 10)
    s = 0.1
    H = hidden_dim
    return {
        'w_in': s * jax.random.normal(ks[0], (H, feature_dim + output_dim), jnp.float32),
        'b_in': s * jax.random.normal(ks[1], (H,), jnp.float32),
        'w_ih': s * jax.random.normal(ks[2], (num_layers, 4 * H, H), jnp.float32),
        'w_hh': s * jax.random.normal(ks[3], (num_layers, 4 * H, H), jnp.float32),
        'b_ih': s * jax.random.normal(ks[4], (num_layers, 4 * H), jnp.float32),
        'b_hh': s * jax.random.normal(ks[5], (num_layers, 4 * H), jnp.float32),
        'w1': s * jax.random.normal(ks[6], (64, H), jnp.float32),
        'b1': s * jax.random.normal(ks[7], (64,), jnp.float32),
        'w2': s * jax.random.normal(ks[8], (1, 64), jnp.float32),
        'b2': s * jax.random.normal(ks[9], (1,), jnp.float32),
    }


if __name__ == "__main__":
    B, T, F, H, L, O = 2, 8, 16, 32, 2, 1

    key = jax.random.PRNGKey(0)
    kx, ky, kp = jax.random.split(key, 3)
    x = jax.random.normal(kx, (B, T, F), jnp.float32)
    y = jax.random.normal(ky, (B, O), jnp.float32)
    params = init_params(kp, F, H, L, O)

    ref = reference_forward(x, y, params)

    # f32 compute path (tight check)
    prep_f32 = prepare_discriminator_weights(params, compute_dtype=jnp.float32)
    out = jax.block_until_ready(discriminator_forward(x, y, prep_f32))
    np.testing.assert_allclose(np.asarray(out), np.asarray(ref), rtol=1e-5, atol=1e-5)

    # bf16 MXU path (v6e/v7x native): bf16 weights/activations, f32 accumulation + f32 h/c state
    prep_bf16 = prepare_discriminator_weights(params, compute_dtype=jnp.bfloat16)
    out_bf16 = jax.block_until_ready(discriminator_forward(x, y, prep_bf16))
    np.testing.assert_allclose(np.asarray(out_bf16), np.asarray(ref), rtol=0.0, atol=5e-2)

    print("KERNEL_OK")
</pallas_src>

<mosaic_0001>
module attributes {stable_mosaic.version = 11 : i64} {
  func.func @_l0_gates_kernel(%arg0: i32, %arg1: memref<64x17xf32, #tpu.memory_space<vmem>>, %arg2: memref<17x512xf32, #tpu.memory_space<vmem>>, %arg3: memref<1x512xf32, #tpu.memory_space<vmem>>, %arg4: memref<64x512xf32, #tpu.memory_space<vmem>>) attributes {dimension_semantics = [#tpu.dimension_semantics<parallel>], iteration_bounds = array<i64: 1>, scalar_prefetch = 0 : i64, scratch_operands = 0 : i64, tpu.core_type = #tpu.core_type<tc>, window_params = [{transform_indices = @transform_0, window_bounds = array<i64: 64, 17>}, {pipeline_mode = #tpu.pipeline_mode<synchronous>, transform_indices = @transform_1, window_bounds = array<i64: 17, 512>}, {pipeline_mode = #tpu.pipeline_mode<synchronous>, transform_indices = @transform_2, window_bounds = array<i64: 1, 512>}, {transform_indices = @transform_3, window_bounds = array<i64: 64, 512>}]} {
    %c0 = arith.constant 0 : index
    %c0_0 = arith.constant 0 : index
    %0 = vector.load %arg1[%c0, %c0_0] : memref<64x17xf32, #tpu.memory_space<vmem>>, vector<64x17xf32>
    %c0_1 = arith.constant 0 : index
    %c0_2 = arith.constant 0 : index
    %1 = vector.load %arg2[%c0_1, %c0_2] : memref<17x512xf32, #tpu.memory_space<vmem>>, vector<17x512xf32>
    %cst = arith.constant dense<0.000000e+00> : vector<64x512xf32>
    %2 = tpu.matmul %0, %1, %cst {dimension_numbers = #tpu.dot_dimension_numbers<[1], [0], [0], [1], [0, 0, 1, 1], [], []>} : vector<64x17xf32>, vector<17x512xf32>, vector<64x512xf32> -> vector<64x512xf32>
    %c0_3 = arith.constant 0 : index
    %c0_4 = arith.constant 0 : index
    %3 = vector.load %arg3[%c0_3, %c0_4] : memref<1x512xf32, #tpu.memory_space<vmem>>, vector<1x512xf32>
    %4 = vector.broadcast %3 : vector<1x512xf32> to vector<64x512xf32>
    %5 = arith.addf %2, %4 : vector<64x512xf32>
    %c0_5 = arith.constant 0 : index
    %c0_6 = arith.constant 0 : index
    %6 = vector.load %arg4[%c0_5, %c0_6] : memref<64x512xf32, #tpu.memory_space<vmem>>, vector<64x512xf32>
    tpu.vector_store %arg4[%c0_5, %c0_6], %5 {strides = array<i32>} : memref<64x512xf32, #tpu.memory_space<vmem>>, vector<64x512xf32>,
    return
  }
  func.func @transform_0(%arg0: i32) -> (i32, i32) {
    %c0_i32 = arith.constant 0 : i32
    %c0_i32_0 = arith.constant 0 : i32
    return %arg0, %c0_i32 : i32, i32
  }
  func.func @transform_1(%arg0: i32) -> (i32, i32) {
    %c0_i32 = arith.constant 0 : i32
    %c0_i32_0 = arith.constant 0 : i32
    %c0_i32_1 = arith.constant 0 : i32
    return %c0_i32, %c0_i32_0 : i32, i32
  }
  func.func @transform_2(%arg0: i32) -> (i32, i32) {
    %c0_i32 = arith.constant 0 : i32
    %c0_i32_0 = arith.constant 0 : i32
    %c0_i32_1 = arith.constant 0 : i32
    return %c0_i32, %c0_i32_0 : i32, i32
  }
  func.func @transform_3(%arg0: i32) -> (i32, i32) {
    %c0_i32 = arith.constant 0 : i32
    %c0_i32_0 = arith.constant 0 : i32
    return %arg0, %c0_i32 : i32, i32
  }
}

</mosaic_0001>

<llo_original>
// kernel: tpu_custom_call.1
$region0: #{tpu_custom_call.1}
  #allocation0 [shape = 'u32[]', space=smem, size = 0x4, offset = 0x4, fixed_abs, tag = 'smem constant byte address 0x4 - core index']
  #allocation1 [shape = 'u32[144,128]{1,0:T(1,128)}', space=vmem, size = 0x12000, scoped, tag = 'internal scratch']
  %s0 = inlined_call_operand.vmem [shape: f32[64,17], index: 0, kind: input, shape index: {}]
  %s1 = inlined_call_operand.hbm [shape: f32[17,512], index: 1, kind: input, shape index: {}]
  %s2 = inlined_call_operand.vmem [shape: f32[1,512], index: 2, kind: input, shape index: {}]
  %s3 = inlined_call_operand.hbm [shape: f32[64,512], index: 3, kind: output, shape index: {}]
  %s4 = sld [smem:[#allocation0]]
  $region26: #{tpu_custom_call.1} parent=0
    _
  %s6 = ssub.s32 1, %s4
  %s7 = scalar_select 0, %s6, %s4
  $region1: #{tpu_custom_call.1} parent=0
    #allocation2 [shape = 'u8[49152]{0}', space=vmem, size = 0xc000, scoped, tag = 'input window, operand 1, single buffered']
    #allocation3 [shape = 's32[1]{0}', space=sflag, size = 0x4, scoped, tag = 'scoped memory for tpu_custom_call.1']
    #allocation4 [shape = 's32[1]{0}', space=sflag, size = 0x4, scoped, tag = 'scoped memory for tpu_custom_call.1']
    #allocation5 [shape = 'u8[131072]{0}', space=vmem, size = 0x20000, scoped, tag = 'output window, operand 0, single buffered']
    %8 = vsyncpa [#allocation3], 0
    %9 = vsyncpa [#allocation4], 0
    // Predicated region
    $region2: #{tpu_custom_call.1} parent=1 // pred_check
      _
    $region3: #{tpu_custom_call.1} parent=1 // pred_check_branch
      %11 = sbr.rel (0) target = $region5
    $region4: #{tpu_custom_call.1} parent=1 // pred_region
      _
    $region5: #{tpu_custom_call.1} parent=1 // pred_fallthru
      _
    // Predicated region
    $region6: #{tpu_custom_call.1} parent=1 // pred_check
      _
    $region7: #{tpu_custom_call.1} parent=1 // pred_check_branch
      %13 = sbr.rel (0) target = $region9
    $region8: #{tpu_custom_call.1} parent=1 // pred_region
      %s15 = ssub.s32 1536, 1536
      %16 = vsyncadd [#allocation3], %s15
      %s17 = sshll.u32 [#allocation2], 4
      %s18 = int_to_ptr.vmem [resolvable:$true] %s17
      %23 = dma.hbm_to_vmem [thread:$0]  %s1, 1536, %s18, [#allocation3], 512, 512, 32
    $region9: #{tpu_custom_call.1} parent=1 // pred_fallthru
      _
    // Predicated region
    $region10: #{tpu_custom_call.1} parent=1 // pred_check
      _
    $region11: #{tpu_custom_call.1} parent=1 // pred_check_branch
      %25 = sbr.rel (0) target = $region13
    $region12: #{tpu_custom_call.1} parent=1 // pred_region
      _
    $region13: #{tpu_custom_call.1} parent=1 // pred_fallthru
      _
    // Predicated region
    $region14: #{tpu_custom_call.1} parent=1 // pred_check
      _
    $region15: #{tpu_custom_call.1} parent=1 // pred_check_branch
      %27 = sbr.rel (0) target = $region17
    $region16: #{tpu_custom_call.1} parent=1 // pred_region
      %28 = dma.done [#allocation3], 1536
    $region17: #{tpu_custom_call.1} parent=1 // pred_fallthru
      _
    %v29 = vld [vmem:[%s0] sm:$0xff]
    %v30 = vld [vmem:[%s0 + $0x8] sm:$0xff]
    %v31 = vld [vmem:[%s0 + $0x10] sm:$0xff]
    %v32 = vld [vmem:[%s0 + $0x18] sm:$0xff]
    %v33 = vld [vmem:[%s0 + $0x20] sm:$0xff]
    %v34 = vld [vmem:[%s0 + $0x28] sm:$0xff]
    %v35 = vld [vmem:[%s0 + $0x30] sm:$0xff]
    %v36 = vld [vmem:[%s0 + $0x38] sm:$0xff]
    %v37 = vld [vmem:[#allocation2] sm:$0xff]
    %v38 = vld [vmem:[#allocation2 + $0x8] sm:$0xff]
    %v39 = vld [vmem:[#allocation2 + $0x10] sm:$0xff]
    %v40 = vld [vmem:[#allocation2 + $0x18] sm:$0xff]
    %v41 = vld [vmem:[#allocation2 + $0x20] sm:$0xff]
    %v42 = vld [vmem:[#allocation2 + $0x28] sm:$0xff]
    %v43 = vld [vmem:[#allocation2 + $0x30] sm:$0xff]
    %v44 = vld [vmem:[#allocation2 + $0x38] sm:$0xff]
    %v45 = vld [vmem:[#allocation2 + $0x40] sm:$0x1]
    %v46 = vld [vmem:[#allocation2 + $0x48] sm:$0x1]
    %v47 = vld [vmem:[#allocation2 + $0x50] sm:$0x1]
    %v48 = vld [vmem:[#allocation2 + $0x58] sm:$0x1]
    %v49 = vld [vmem:[%s2] sm:$0xf]
    %v51 = vlaneseq
    %v52 = vshrl.u32 %v51, 7
    %v53 = vsub.s32 0, %v52
    %v54 = vrot.slane %v49, %v53
    %v55 = vlaneseq
    %v56 = vshrl.u32 %v55, 7
    %v57 = vsub.s32 1, %v56
    %v58 = vrot.slane %v49, %v57
    %v59 = vlaneseq
    %v60 = vshrl.u32 %v59, 7
    %v61 = vsub.s32 2, %v60
    %v62 = vrot.slane %v49, %v61
    %v63 = vlaneseq
    %v64 = vshrl.u32 %v63, 7
    %v65 = vsub.s32 3, %v64
    %v66 = vrot.slane %v49, %v65
    %vm71 = vcmask 138240
    %v73 = vsel %vm71, %v29, 0
    %v76 = vsel %vm71, %v30, 0
    %v79 = vsel %vm71, %v31, 0
    %v82 = vsel %vm71, %v32, 0
    %v85 = vsel %vm71, %v33, 0
    %v88 = vsel %vm71, %v34, 0
    %v91 = vsel %vm71, %v35, 0
    %v94 = vsel %vm71, %v36, 0
    %vm96 = vcmask 1040384
    %v98 = vsel %vm96, %v45, 0
    %v101 = vsel %vm96, %v46, 0
    %v104 = vsel %vm96, %v47, 0
    %v107 = vsel %vm96, %v48, 0
    %109 = vmatprep.subr.mxu0 0.0
    %110 = vmatpush1.msra.mxu0 0.0
    %111 = vmatprep.subr.mxu0 0.0
    %112 = vmatpush1.msra.mxu0 0.0
    %113 = vmatprep.subr.mxu0 0.0
    %114 = vmatpush1.msra.mxu0 0.0
    %115 = vmatprep.subr.mxu0 0.0
    %116 = vmatpush1.msra.mxu0 0.0
    %117 = vmatprep.subr.mxu0 0.0
    %118 = vmatpush1.msra.mxu0 0.0
    %119 = vmatprep.subr.mxu0 0.0
    %120 = vmatpush1.msra.mxu0 0.0
    %121 = vmatprep.subr.mxu0 0.0
    %122 = vmatpush1.msra.mxu0 0.0
    %123 = vmatprep.subr.mxu0 0.0
    %124 = vmatpush1.msra.mxu0 0.0
    %125 = vmatprep.subr.mxu0 0.0
    %126 = vmatpush1.msra.mxu0 0.0
    %127 = vmatprep.subr.mxu0 0.0
    %128 = vmatpush1.msra.mxu0 0.0
    %129 = vmatprep.subr.mxu0 0.0
    %130 = vmatpush1.msra.mxu0 0.0
    %131 = vmatprep.subr.mxu0 0.0
    %132 = vmatpush1.msra.mxu0 0.0
    %133 = vmatprep.subr.mxu0 0.0
    %134 = vmatpush1.msra.mxu0 0.0
    %135 = vmatprep.subr.mxu0 %v101
    %136 = vmatpush1.msra.mxu0 %v98
    %137 = vmatprep.subr.mxu0 %v42
    %138 = vmatpush1.msra.mxu0 %v41
    %139 = vmatprep.subr.mxu0 %v38
    %140 = vmatpush1.msra.mxu0 %v37
    %141 = vmatprep.subr.mxu0 0.0
    %142 = vmatpush2.msra.mxu0 0.0
    %143 = vmatprep.subr.mxu0 0.0
    %144 = vmatpush2.msra.mxu0 0.0
    %145 = vmatprep.subr.mxu0 0.0
    %146 = vmatpush2.msra.mxu0 0.0
    %147 = vmatprep.subr.mxu0 0.0
    %148 = vmatpush2.msra.mxu0 0.0
    %149 = vmatprep.subr.mxu0 0.0
    %150 = vmatpush2.msra.mxu0 0.0
    %151 = vmatprep.subr.mxu0 0.0
    %152 = vmatpush2.msra.mxu0 0.0
    %153 = vmatprep.subr.mxu0 0.0
    %154 = vmatpush2.msra.mxu0 0.0
    %155 = vmatprep.subr.mxu0 0.0
    %156 = vmatpush2.msra.mxu0 0.0
    %157 = vmatprep.subr.mxu0 0.0
    %158 = vmatpush2.msra.mxu0 0.0
    %159 = vmatprep.subr.mxu0 0.0
    %160 = vmatpush2.msra.mxu0 0.0
    %161 = vmatprep.subr.mxu0 0.0
    %162 = vmatpush2.msra.mxu0 0.0
    %163 = vmatprep.subr.mxu0 0.0
    %164 = vmatpush2.msra.mxu0 0.0
    %165 = vmatprep.subr.mxu0 0.0
    %166 = vmatpush2.msra.mxu0 0.0
    %167 = vmatprep.subr.mxu0 0.0
    %168 = vmatpush2.msra.mxu0 0.0
    %169 = vmatprep.subr.mxu0 0.0
    %170 = vmatpush2.msra.mxu0 0.0
    %171 = vmatprep.subr.mxu0 0.0
    %172 = vmatpush2.msra.mxu0 0.0
    %173 = vmatprep.mubr.f32.mxu0 0.0
    %174 = vmatmul.mubr.f32.gmra.mxu0 %v73
    %v175 = vpop.f32.mrf.mxu0
    %v176 = vadd.f32 %v54, %v175
    %v177 = vpop.f32.mrf.mxu0
    %v178 = vadd.f32 %v58, %v177
    %179 = vmatprep.mubr.f32.mxu0 0.0
    %180 = vmatmul.mubr.f32.gmra.mxu0 %v76
    %v181 = vpop.f32.mrf.mxu0
    %v182 = vadd.f32 %v54, %v181
    %v183 = vpop.f32.mrf.mxu0
    %v184 = vadd.f32 %v58, %v183
    %185 = vmatprep.mubr.f32.mxu0 0.0
    %186 = vmatmul.mubr.f32.gmra.mxu0 %v79
    %v187 = vpop.f32.mrf.mxu0
    %v188 = vadd.f32 %v54, %v187
    %v189 = vpop.f32.mrf.mxu0
    %v190 = vadd.f32 %v58, %v189
    %191 = vmatprep.mubr.f32.mxu0 0.0
    %192 = vmatmul.mubr.f32.gmra.mxu0 %v82
    %v193 = vpop.f32.mrf.mxu0
    %v194 = vadd.f32 %v54, %v193
    %v195 = vpop.f32.mrf.mxu0
    %v196 = vadd.f32 %v58, %v195
    %197 = vmatprep.mubr.f32.mxu0 0.0
    %198 = vmatmul.mubr.f32.gmra.mxu0 %v85
    %v199 = vpop.f32.mrf.mxu0
    %v200 = vadd.f32 %v54, %v199
    %v201 = vpop.f32.mrf.mxu0
    %v202 = vadd.f32 %v58, %v201
    %203 = vmatprep.mubr.f32.mxu0 0.0
    %204 = vmatmul.mubr.f32.gmra.mxu0 %v88
    %v205 = vpop.f32.mrf.mxu0
    %v206 = vadd.f32 %v54, %v205
    %v207 = vpop.f32.mrf.mxu0
    %v208 = vadd.f32 %v58, %v207
    %209 = vmatprep.mubr.f32.mxu0 0.0
    %210 = vmatmul.mubr.f32.gmra.mxu0 %v91
    %v211 = vpop.f32.mrf.mxu0
    %v212 = vadd.f32 %v54, %v211
    %v213 = vpop.f32.mrf.mxu0
    %v214 = vadd.f32 %v58, %v213
    %215 = vmatprep.mubr.f32.mxu0 0.0
    %216 = vmatmul.mubr.f32.gmra.mxu0 %v94
    %v217 = vpop.f32.mrf.mxu0
    %v218 = vadd.f32 %v54, %v217
    %v219 = vpop.f32.mrf.mxu0
    %v220 = vadd.f32 %v58, %v219
    %221 = vdwg.mxu0
    %222 = vmatprep.subr.mxu0 0.0
    %223 = vmatpush1.msra.mxu0 0.0
    %224 = vmatprep.subr.mxu0 0.0
    %225 = vmatpush1.msra.mxu0 0.0
    %226 = vmatprep.subr.mxu0 0.0
    %227 = vmatpush1.msra.mxu0 0.0
    %228 = vmatprep.subr.mxu0 0.0
    %229 = vmatpush1.msra.mxu0 0.0
    %230 = vmatprep.subr.mxu0 0.0
    %231 = vmatpush1.msra.mxu0 0.0
    %232 = vmatprep.subr.mxu0 0.0
    %233 = vmatpush1.msra.mxu0 0.0
    %234 = vmatprep.subr.mxu0 0.0
    %235 = vmatpush1.msra.mxu0 0.0
    %236 = vmatprep.subr.mxu0 0.0
    %237 = vmatpush1.msra.mxu0 0.0
    %238 = vmatprep.subr.mxu0 0.0
    %239 = vmatpush1.msra.mxu0 0.0
    %240 = vmatprep.subr.mxu0 0.0
    %241 = vmatpush1.msra.mxu0 0.0
    %242 = vmatprep.subr.mxu0 0.0
    %243 = vmatpush1.msra.mxu0 0.0
    %244 = vmatprep.subr.mxu0 0.0
    %245 = vmatpush1.msra.mxu0 0.0
    %246 = vmatprep.subr.mxu0 0.0
    %247 = vmatpush1.msra.mxu0 0.0
    %248 = vmatprep.subr.mxu0 %v107
    %249 = vmatpush1.msra.mxu0 %v104
    %250 = vmatprep.subr.mxu0 %v44
    %251 = vmatpush1.msra.mxu0 %v43
    %252 = vmatprep.subr.mxu0 %v40
    %253 = vmatpush1.msra.mxu0 %v39
    %254 = vmatprep.subr.mxu0 0.0
    %255 = vmatpush2.msra.mxu0 0.0
    %256 = vmatprep.subr.mxu0 0.0
    %257 = vmatpush2.msra.mxu0 0.0
    %258 = vmatprep.subr.mxu0 0.0
    %259 = vmatpush2.msra.mxu0 0.0
    %260 = vmatprep.subr.mxu0 0.0
    %261 = vmatpush2.msra.mxu0 0.0
    %262 = vmatprep.subr.mxu0 0.0
    %263 = vmatpush2.msra.mxu0 0.0
    %264 = vmatprep.subr.mxu0 0.0
    %265 = vmatpush2.msra.mxu0 0.0
    %266 = vmatprep.subr.mxu0 0.0
    %267 = vmatpush2.msra.mxu0 0.0
    %268 = vmatprep.subr.mxu0 0.0
    %269 = vmatpush2.msra.mxu0 0.0
    %270 = vmatprep.subr.mxu0 0.0
    %271 = vmatpush2.msra.mxu0 0.0
    %272 = vmatprep.subr.mxu0 0.0
    %273 = vmatpush2.msra.mxu0 0.0
    %274 = vmatprep.subr.mxu0 0.0
    %275 = vmatpush2.msra.mxu0 0.0
    %276 = vmatprep.subr.mxu0 0.0
    %277 = vmatpush2.msra.mxu0 0.0
    %278 = vmatprep.subr.mxu0 0.0
    %279 = vmatpush2.msra.mxu0 0.0
    %280 = vmatprep.subr.mxu0 0.0
    %281 = vmatpush2.msra.mxu0 0.0
    %282 = vmatprep.subr.mxu0 0.0
    %283 = vmatpush2.msra.mxu0 0.0
    %284 = vmatprep.subr.mxu0 0.0
    %285 = vmatpush2.msra.mxu0 0.0
    %286 = vmatprep.mubr.f32.mxu0 0.0
    %287 = vmatmul.mubr.f32.gmra.mxu0 %v73
    %v288 = vpop.f32.mrf.mxu0
    %v289 = vadd.f32 %v62, %v288
    %v290 = vpop.f32.mrf.mxu0
    %v291 = vadd.f32 %v66, %v290
    %292 = vmatprep.mubr.f32.mxu0 0.0
    %293 = vmatmul.mubr.f32.gmra.mxu0 %v76
    %v294 = vpop.f32.mrf.mxu0
    %v295 = vadd.f32 %v62, %v294
    %v296 = vpop.f32.mrf.mxu0
    %v297 = vadd.f32 %v66, %v296
    %298 = vmatprep.mubr.f32.mxu0 0.0
    %299 = vmatmul.mubr.f32.gmra.mxu0 %v79
    %v300 = vpop.f32.mrf.mxu0
    %v301 = vadd.f32 %v62, %v300
    %v302 = vpop.f32.mrf.mxu0
    %v303 = vadd.f32 %v66, %v302
    %304 = vmatprep.mubr.f32.mxu0 0.0
    %305 = vmatmul.mubr.f32.gmra.mxu0 %v82
    %v306 = vpop.f32.mrf.mxu0
    %v307 = vadd.f32 %v62, %v306
    %v308 = vpop.f32.mrf.mxu0
    %v309 = vadd.f32 %v66, %v308
    %310 = vmatprep.mubr.f32.mxu0 0.0
    %311 = vmatmul.mubr.f32.gmra.mxu0 %v85
    %v312 = vpop.f32.mrf.mxu0
    %v313 = vadd.f32 %v62, %v312
    %v314 = vpop.f32.mrf.mxu0
    %v315 = vadd.f32 %v66, %v314
    %316 = vmatprep.mubr.f32.mxu0 0.0
    %317 = vmatmul.mubr.f32.gmra.mxu0 %v88
    %v318 = vpop.f32.mrf.mxu0
    %v319 = vadd.f32 %v62, %v318
    %v320 = vpop.f32.mrf.mxu0
    %v321 = vadd.f32 %v66, %v320
    %322 = vmatprep.mubr.f32.mxu0 0.0
    %323 = vmatmul.mubr.f32.gmra.mxu0 %v91
    %v324 = vpop.f32.mrf.mxu0
    %v325 = vadd.f32 %v62, %v324
    %v326 = vpop.f32.mrf.mxu0
    %v327 = vadd.f32 %v66, %v326
    %328 = vmatprep.mubr.f32.mxu0 0.0
    %329 = vmatmul.mubr.f32.gmra.mxu0 %v94
    %v330 = vpop.f32.mrf.mxu0
    %v331 = vadd.f32 %v62, %v330
    %v332 = vpop.f32.mrf.mxu0
    %v333 = vadd.f32 %v66, %v332
    %334 = vdwg.mxu0
    %335 = vst [vmem:[#allocation5] sm:$0xff] %v176
    %336 = vst [vmem:[#allocation5 + $0x8] sm:$0xff] %v178
    %337 = vst [vmem:[#allocation5 + $0x10] sm:$0xff] %v289
    %338 = vst [vmem:[#allocation5 + $0x18] sm:$0xff] %v291
    %339 = vst [vmem:[#allocation5 + $0x20] sm:$0xff] %v182
    %340 = vst [vmem:[#allocation5 + $0x28] sm:$0xff] %v184
    %341 = vst [vmem:[#allocation5 + $0x30] sm:$0xff] %v295
    %342 = vst [vmem:[#allocation5 + $0x38] sm:$0xff] %v297
    %343 = vst [vmem:[#allocation5 + $0x40] sm:$0xff] %v188
    %344 = vst [vmem:[#allocation5 + $0x48] sm:$0xff] %v190
    %345 = vst [vmem:[#allocation5 + $0x50] sm:$0xff] %v301
    %346 = vst [vmem:[#allocation5 + $0x58] sm:$0xff] %v303
    %347 = vst [vmem:[#allocation5 + $0x60] sm:$0xff] %v194
    %348 = vst [vmem:[#allocation5 + $0x68] sm:$0xff] %v196
    %349 = vst [vmem:[#allocation5 + $0x70] sm:$0xff] %v307
    %350 = vst [vmem:[#allocation5 + $0x78] sm:$0xff] %v309
    %351 = vst [vmem:[#allocation5 + $0x80] sm:$0xff] %v200
    %352 = vst [vmem:[#allocation5 + $0x88] sm:$0xff] %v202
    %353 = vst [vmem:[#allocation5 + $0x90] sm:$0xff] %v313
    %354 = vst [vmem:[#allocation5 + $0x98] sm:$0xff] %v315
    %355 = vst [vmem:[#allocation5 + $0xa0] sm:$0xff] %v206
    %356 = vst [vmem:[#allocation5 + $0xa8] sm:$0xff] %v208
    %357 = vst [vmem:[#allocation5 + $0xb0] sm:$0xff] %v319
    %358 = vst [vmem:[#allocation5 + $0xb8] sm:$0xff] %v321
    %359 = vst [vmem:[#allocation5 + $0xc0] sm:$0xff] %v212
    %360 = vst [vmem:[#allocation5 + $0xc8] sm:$0xff] %v214
    %361 = vst [vmem:[#allocation5 + $0xd0] sm:$0xff] %v325
    %362 = vst [vmem:[#allocation5 + $0xd8] sm:$0xff] %v327
    %363 = vst [vmem:[#allocation5 + $0xe0] sm:$0xff] %v218
    %364 = vst [vmem:[#allocation5 + $0xe8] sm:$0xff] %v220
    %365 = vst [vmem:[#allocation5 + $0xf0] sm:$0xff] %v331
    %366 = vst [vmem:[#allocation5 + $0xf8] sm:$0xff] %v333
    // Predicated region
    $region18: #{tpu_custom_call.1} parent=1 // pred_check
      _
    $region19: #{tpu_custom_call.1} parent=1 // pred_check_branch
      %368 = sbr.rel (0) target = $region21
    $region20: #{tpu_custom_call.1} parent=1 // pred_region
      %s370 = ssub.s32 4096, 4096
      %371 = vsyncadd [#allocation4], %s370
      %s372 = sshll.u32 [#allocation5], 4
      %s373 = int_to_ptr.vmem [resolvable:$true] %s372
      %378 = dma.vmem_to_hbm [thread:$0]  %s373, 4096, %s3, [#allocation4], 512, 512, 32
    $region21: #{tpu_custom_call.1} parent=1 // pred_fallthru
      _
    // Predicated region
    $region22: #{tpu_custom_call.1} parent=1 // pred_check
      _
    $region23: #{tpu_custom_call.1} parent=1 // pred_check_branch
      %380 = sbr.rel (0) target = $region25
    $region24: #{tpu_custom_call.1} parent=1 // pred_region
      %381 = dma.done [#allocation4], 4096
    $region25: #{tpu_custom_call.1} parent=1 // pred_fallthru
      _
    %382 = vsyncpa [#allocation3], 1
    %383 = vsyncpa [#allocation4], 1

</llo_original>
